<compile_context>
chip_gen: v5e
topology: v5e:2x2
jax: 0.10.0
libtpu: 0.0.40
codegen_flags: <defaults>
</compile_context>

<pallas_src>
import functools

import jax
import jax.numpy as jnp
from jax import lax
from jax.experimental import pallas as pl
from jax.experimental.pallas import tpu as pltpu


_LANE = 128
_SUBLANE = 8


def _round_up(x, m):
    return ((x + m - 1) // m) * m


def _tpu_topology():
    """Return (physical VMEM bytes per core, #TensorCores sharing the grid)."""
    vmem_bytes = None
    num_cores = 1
    try:
        info = pltpu.get_tpu_info()
        v = getattr(info, "vmem_capacity_bytes", None)
        if v:
            vmem_bytes = int(v)
        for name in ("num_tensorcores", "tensorcores_per_chip",
                     "num_cores", "cores_per_chip"):
            c = getattr(info, name, None)
            if isinstance(c, int) and c > 0:
                num_cores = c
                break
    except Exception:
        pass
    try:
        kind = jax.devices()[0].device_kind.lower()
    except Exception:
        kind = ""
    if ("v7" in kind) or ("tpu7" in kind):
        num_cores = max(num_cores, 2)
        if vmem_bytes is None:
            vmem_bytes = 64 << 20
    if vmem_bytes is None:
        vmem_bytes = 128 << 20  # v5e / v6e
    return vmem_bytes, num_cores


def _rmsnorm_kernel(x_ref, gamma_ref, o_ref, *, scale, eps):
    """One row block, full D lane-dense.  inv = rsqrt(max(sum x^2, eps^2))*sqrt(D)."""
    x = x_ref[...].astype(jnp.float32)                       # (tm, D)
    sq = jnp.sum(x * x, axis=-1, keepdims=True)              # (tm, 1)
    inv = lax.rsqrt(jnp.maximum(sq, eps * eps)) * scale      # EUP rsqrt, scale folded
    g = gamma_ref[...].astype(jnp.float32)                   # (1, D)
    o_ref[...] = (x * inv * g).astype(o_ref.dtype)


def _rmsnorm_packed_kernel(x_ref, gamma_ref, seg_ref, o_ref, *, scale, eps):
    """k rows packed per lane row (L = k*D = 128); segmented reduce on the MXU."""
    x = x_ref[...].astype(jnp.float32)                       # (tm, L)
    # seg_ref is a block-diagonal 0/1 matrix: sq[:, j] = sum of squares of j's segment.
    sq = jnp.dot(x * x, seg_ref[...], preferred_element_type=jnp.float32)   # (tm, L)
    inv = lax.rsqrt(jnp.maximum(sq, eps * eps)) * scale
    g = gamma_ref[...].astype(jnp.float32)                   # (1, L), gamma tiled k times
    o_ref[...] = (x * inv * g).astype(o_ref.dtype)


def _choose_block_rows(n_rows, lane_dim, itemsize, vmem_limit, num_cores):
    """Pick a sublane-aligned row-block size from a VMEM budget + byte target."""
    # Double-buffered input + output blocks plus ~2 f32-sized live intermediates.
    per_row_vmem = 4 * lane_dim * itemsize + 2 * lane_dim * 4
    budget = vmem_limit - (2 << 20)  # headroom: gamma/seg blocks, scalars
    if per_row_vmem * min(n_rows, _SUBLANE) > budget:
        # TODO(synk): for huge feature dims, tile D with a second "arbitrary"
        # grid axis and a (tm, 1) accumulator in VMEM scratch (two-pass norm).
        raise ValueError(
            f"RMSNorm feature dim {lane_dim} too large for single-pass kernel "
            f"(needs {per_row_vmem * min(n_rows, _SUBLANE)} B > {budget} B of VMEM).")
    if n_rows <= _SUBLANE:
        return int(n_rows)  # full-array block (allowed: equals array dims)

    rows_vmem = budget // per_row_vmem
    target_block_bytes = (8 << 20) if vmem_limit >= (64 << 20) else (6 << 20)
    rows_target = max(_SUBLANE, target_block_bytes // max(1, lane_dim * itemsize))
    rows = min(rows_vmem, rows_target, _round_up(n_rows, _SUBLANE))

    # On multi-TC chips keep >= 2 grid steps per core so the megacore split
    # still double-buffers per core.  No forced split on single-TC chips.
    if num_cores > 1:
        min_steps = 2 * num_cores
        if n_rows >= _SUBLANE * min_steps:
            rows = min(rows, (n_rows - 1) // (min_steps - 1))

    rows = max(_SUBLANE, (rows // _SUBLANE) * _SUBLANE)
    return int(rows)


def rmsnorm(x, gamma, *, block_rows=None, eps=1e-12, interpret=False):
    """F.normalize(x, dim=-1) * sqrt(D) * gamma.  Same shape/dtype as x."""
    orig_shape = x.shape
    D = orig_shape[-1]
    scale = float(D) ** 0.5

    x2d = x.reshape(-1, D)
    R = x2d.shape[0]
    x_itemsize = jnp.dtype(x.dtype).itemsize

    vmem_physical, num_cores = _tpu_topology()
    # ~3/4 of physical VMEM: 96 MiB on 128 MiB chips, 48 MiB on v7x's 64 MiB.
    vmem_limit = int(min(max((vmem_physical * 3) // 4, 32 << 20), 96 << 20))

    # Pack k rows per lane row for narrow feature dims so stores stay lane-dense.
    pack = 1
    if D < _LANE and (_LANE % D == 0) and R > 0 and (R % (_LANE // D) == 0):
        pack = _LANE // D

    if pack > 1:
        L = pack * D
        n_rows, lane_dim = R // pack, L
        x_in = x2d.reshape(n_rows, L)
        gamma_in = jnp.tile(gamma.reshape(1, D), (1, pack))          # (1, L)
        lane_seg = jnp.arange(L, dtype=jnp.int32) // D
        seg_mat = (lane_seg[:, None] == lane_seg[None, :]).astype(jnp.float32)  # (L, L)
        kernel = functools.partial(_rmsnorm_packed_kernel, scale=scale, eps=eps)
        extra_inputs = (seg_mat,)
        extra_specs = [pl.BlockSpec((L, L), lambda i: (0, 0))]
    else:
        n_rows, lane_dim = R, D
        x_in = x2d
        gamma_in = gamma.reshape(1, D)
        kernel = functools.partial(_rmsnorm_kernel, scale=scale, eps=eps)
        extra_inputs = ()
        extra_specs = []

    if block_rows is None:
        block_rows = _choose_block_rows(n_rows, lane_dim, x_itemsize,
                                        vmem_limit, num_cores)

    grid = (pl.cdiv(n_rows, block_rows),)

    cost = pl.CostEstimate(
        flops=6 * R * D,
        transcendentals=R,
        bytes_accessed=2 * R * D * x_itemsize + D * jnp.dtype(gamma.dtype).itemsize,
    )

    out2d = pl.pallas_call(
        kernel,
        out_shape=jax.ShapeDtypeStruct((n_rows, lane_dim), x.dtype),
        grid_spec=pltpu.PrefetchScalarGridSpec(
            num_scalar_prefetch=0,
            grid=grid,
            in_specs=[
                pl.BlockSpec((block_rows, lane_dim), lambda i: (i, 0)),
                pl.BlockSpec((1, lane_dim), lambda i: (0, 0)),
                *extra_specs,
            ],
            out_specs=pl.BlockSpec((block_rows, lane_dim), lambda i: (i, 0)),
        ),
        compiler_params=pltpu.CompilerParams(
            dimension_semantics=("parallel",),
            vmem_limit_bytes=vmem_limit,
        ),
        cost_estimate=cost,
        interpret=interpret,
    )(x_in, gamma_in, *extra_inputs)

    return out2d.reshape(orig_shape)


def rmsnorm_ref(x, gamma, eps=1e-12):
    xf = x.astype(jnp.float32)
    norm = jnp.maximum(jnp.sqrt(jnp.sum(xf * xf, axis=-1, keepdims=True)), eps)
    scale = float(x.shape[-1]) ** 0.5
    return (xf / norm * scale * gamma.astype(jnp.float32)).astype(x.dtype)


if __name__ == "__main__":
    key = jax.random.PRNGKey(0)
    k1, k2, k3, k4 = jax.random.split(key, 4)

    # Small shape consistent with the module: (batch, seq, hidden), f32.
    # D=32 exercises the lane-dense row-packing path (k = 128/32 = 4 rows/lane-row).
    batch, seq, dim = 2, 8, 32
    x = jax.random.normal(k1, (batch, seq, dim), dtype=jnp.float32)
    gamma = jnp.ones((dim,), dtype=jnp.float32)   # nn.Parameter(torch.ones(dim))

    out = jax.block_until_ready(rmsnorm(x, gamma))
    ref = rmsnorm_ref(x, gamma)
    assert out.shape == x.shape and out.dtype == x.dtype
    assert jnp.allclose(out, ref, atol=1e-5, rtol=1e-5)

    # Lane-dense D (multiple of 128), bf16, row count not divisible by block_rows
    # (exercises the unpacked path + boundary-block masking).
    dim2 = 256
    x2 = jax.random.normal(k2, (100, dim2), dtype=jnp.bfloat16)
    gamma2 = (1.0 + 0.1 * jax.random.normal(k3, (dim2,), jnp.float32)).astype(jnp.bfloat16)
    out2 = jax.block_until_ready(rmsnorm(x2, gamma2))
    ref2 = rmsnorm_ref(x2, gamma2)
    assert out2.shape == x2.shape and out2.dtype == x2.dtype
    assert jnp.allclose(out2.astype(jnp.float32), ref2.astype(jnp.float32),
                        atol=2e-2, rtol=2e-2)

    # Narrow D where rows don't divide the pack factor -> unpacked fallback.
    x3 = jax.random.normal(k4, (7, dim), dtype=jnp.float32)
    out3 = jax.block_until_ready(rmsnorm(x3, gamma))
    ref3 = rmsnorm_ref(x3, gamma)
    assert jnp.allclose(out3, ref3, atol=1e-5, rtol=1e-5)

    print("KERNEL_OK")
</pallas_src>

<mosaic_0001>
module attributes {stable_mosaic.version = 11 : i64} {
  func.func @_rmsnorm_packed_kernel(%arg0: i32, %arg1: memref<4x128xf32, #tpu.memory_space<vmem>>, %arg2: memref<1x128xf32, #tpu.memory_space<vmem>>, %arg3: memref<128x128xf32, #tpu.memory_space<vmem>>, %arg4: memref<4x128xf32, #tpu.memory_space<vmem>>) attributes {dimension_semantics = [#tpu.dimension_semantics<parallel>], iteration_bounds = array<i64: 1>, scalar_prefetch = 0 : i64, scratch_operands = 0 : i64, tpu.core_type = #tpu.core_type<tc>, window_params = [{transform_indices = @transform_0, window_bounds = array<i64: 4, 128>}, {pipeline_mode = #tpu.pipeline_mode<synchronous>, transform_indices = @transform_1, window_bounds = array<i64: 1, 128>}, {pipeline_mode = #tpu.pipeline_mode<synchronous>, transform_indices = @transform_2, window_bounds = array<i64: 128, 128>}, {transform_indices = @transform_3, window_bounds = array<i64: 4, 128>}]} {
    %c0 = arith.constant 0 : index
    %c0_0 = arith.constant 0 : index
    %0 = vector.load %arg1[%c0, %c0_0] : memref<4x128xf32, #tpu.memory_space<vmem>>, vector<4x128xf32>
    %1 = arith.mulf %0, %0 : vector<4x128xf32>
    %c0_1 = arith.constant 0 : index
    %c0_2 = arith.constant 0 : index
    %2 = vector.load %arg3[%c0_1, %c0_2] : memref<128x128xf32, #tpu.memory_space<vmem>>, vector<128x128xf32>
    %cst = arith.constant dense<0.000000e+00> : vector<4x128xf32>
    %3 = tpu.matmul %1, %2, %cst {dimension_numbers = #tpu.dot_dimension_numbers<[1], [0], [0], [1], [0, 0, 1, 1], [], []>} : vector<4x128xf32>, vector<128x128xf32>, vector<4x128xf32> -> vector<4x128xf32>
    %cst_3 = arith.constant 1.000000e-24 : f32
    %4 = vector.broadcast %cst_3 : f32 to vector<4x128xf32>
    %5 = arith.maximumf %3, %4 : vector<4x128xf32>
    %6 = math.rsqrt %5 : vector<4x128xf32>
    %cst_4 = arith.constant 5.65685415 : f32
    %7 = vector.broadcast %cst_4 : f32 to vector<4x128xf32>
    %8 = arith.mulf %6, %7 : vector<4x128xf32>
    %c0_5 = arith.constant 0 : index
    %c0_6 = arith.constant 0 : index
    %9 = vector.load %arg2[%c0_5, %c0_6] : memref<1x128xf32, #tpu.memory_space<vmem>>, vector<1x128xf32>
    %10 = arith.mulf %0, %8 : vector<4x128xf32>
    %11 = vector.broadcast %9 : vector<1x128xf32> to vector<4x128xf32>
    %12 = arith.mulf %10, %11 : vector<4x128xf32>
    %c0_7 = arith.constant 0 : index
    %c0_8 = arith.constant 0 : index
    %13 = vector.load %arg4[%c0_7, %c0_8] : memref<4x128xf32, #tpu.memory_space<vmem>>, vector<4x128xf32>
    tpu.vector_store %arg4[%c0_7, %c0_8], %12 {strides = array<i32>} : memref<4x128xf32, #tpu.memory_space<vmem>>, vector<4x128xf32>,
    return
  }
  func.func @transform_0(%arg0: i32) -> (i32, i32) {
    %c0_i32 = arith.constant 0 : i32
    %c0_i32_0 = arith.constant 0 : i32
    return %arg0, %c0_i32 : i32, i32
  }
  func.func @transform_1(%arg0: i32) -> (i32, i32) {
    %c0_i32 = arith.constant 0 : i32
    %c0_i32_0 = arith.constant 0 : i32
    %c0_i32_1 = arith.constant 0 : i32
    return %c0_i32, %c0_i32_0 : i32, i32
  }
  func.func @transform_2(%arg0: i32) -> (i32, i32) {
    %c0_i32 = arith.constant 0 : i32
    %c0_i32_0 = arith.constant 0 : i32
    %c0_i32_1 = arith.constant 0 : i32
    return %c0_i32, %c0_i32_0 : i32, i32
  }
  func.func @transform_3(%arg0: i32) -> (i32, i32) {
    %c0_i32 = arith.constant 0 : i32
    %c0_i32_0 = arith.constant 0 : i32
    return %arg0, %c0_i32 : i32, i32
  }
}

</mosaic_0001>

<llo_original>
// kernel: tpu_custom_call.1
$region0: #{tpu_custom_call.1}
  #allocation0 [shape = 'u32[]', space=smem, size = 0x4, offset = 0x4, fixed_abs, tag = 'smem constant byte address 0x4 - core index']
  #allocation1 [shape = 'u32[72,128]{1,0:T(1,128)}', space=vmem, size = 0x9000, scoped, tag = 'internal scratch']
  %s0 = inlined_call_operand.hbm [shape: f32[4,128], index: 0, kind: input, shape index: {}]
  %s1 = inlined_call_operand.hbm [shape: f32[1,128], index: 1, kind: input, shape index: {}]
  %s2 = inlined_call_operand.hbm [shape: f32[128,128], index: 2, kind: input, shape index: {}]
  %s3 = inlined_call_operand.hbm [shape: f32[4,128], index: 3, kind: output, shape index: {}]
  %s4 = sld [smem:[#allocation0]]
  $region34: #{tpu_custom_call.1} parent=0
    _
  %s6 = ssub.s32 1, %s4
  %s7 = scalar_select 0, %s6, %s4
  $region1: #{tpu_custom_call.1} parent=0
    #allocation2 [shape = 'u8[2048]{0}', space=vmem, size = 0x800, scoped, tag = 'input window, operand 0, single buffered']
    #allocation3 [shape = 's32[1]{0}', space=sflag, size = 0x4, scoped, tag = 'scoped memory for tpu_custom_call.1']
    #allocation4 [shape = 's32[1]{0}', space=sflag, size = 0x4, scoped, tag = 'scoped memory for tpu_custom_call.1']
    #allocation5 [shape = 'u8[512]{0}', space=vmem, size = 0x400, scoped, tag = 'input window, operand 1, single buffered']
    #allocation6 [shape = 's32[1]{0}', space=sflag, size = 0x4, scoped, tag = 'scoped memory for tpu_custom_call.1']
    #allocation7 [shape = 'u8[65536]{0}', space=vmem, size = 0x10000, scoped, tag = 'input window, operand 2, single buffered']
    #allocation8 [shape = 'u8[2048]{0}', space=vmem, size = 0x800, scoped, tag = 'output window, operand 0, single buffered']
    %8 = vsyncpa [#allocation3], 0
    %9 = vsyncpa [#allocation6], 0
    %10 = vsyncpa [#allocation4], 0
    // Predicated region
    $region2: #{tpu_custom_call.1} parent=1 // pred_check
      _
    $region3: #{tpu_custom_call.1} parent=1 // pred_check_branch
      %12 = sbr.rel (0) target = $region5
    $region4: #{tpu_custom_call.1} parent=1 // pred_region
      %14 = vsyncadd [#allocation3], 0
      %s16 = sshll.u32 %s0, 4
      %s17 = int_to_ptr.hbm [resolvable:$true] %s16
      %s18 = sshll.u32 [#allocation2], 4
      %s19 = int_to_ptr.vmem [resolvable:$true] %s18
      %21 = dma.hbm_to_vmem [thread:$0]  %s17, 64, %s19, [#allocation3]
    $region5: #{tpu_custom_call.1} parent=1 // pred_fallthru
      _
    // Predicated region
    $region6: #{tpu_custom_call.1} parent=1 // pred_check
      _
    $region7: #{tpu_custom_call.1} parent=1 // pred_check_branch
      %23 = sbr.rel (0) target = $region9
    $region8: #{tpu_custom_call.1} parent=1 // pred_region
      %25 = vsyncadd [#allocation6], 0
      %s27 = sshll.u32 %s1, 4
      %s28 = int_to_ptr.hbm [resolvable:$true] %s27
      %s29 = sshll.u32 [#allocation5], 4
      %s30 = int_to_ptr.vmem [resolvable:$true] %s29
      %32 = dma.hbm_to_vmem [thread:$0]  %s28, 16, %s30, [#allocation6]
    $region9: #{tpu_custom_call.1} parent=1 // pred_fallthru
      _
    // Predicated region
    $region10: #{tpu_custom_call.1} parent=1 // pred_check
      _
    $region11: #{tpu_custom_call.1} parent=1 // pred_check_branch
      %34 = sbr.rel (0) target = $region13
    $region12: #{tpu_custom_call.1} parent=1 // pred_region
      %36 = vsyncadd [#allocation6], 0
      %s37 = sshll.u32 %s2, 4
      %s38 = int_to_ptr.hbm [resolvable:$true] %s37
      %s39 = sshll.u32 [#allocation7], 4
      %s40 = int_to_ptr.vmem [resolvable:$true] %s39
      %45 = dma.hbm_to_vmem [thread:$0]  %s38, 2048, %s40, [#allocation6], 128, 128, 8
    $region13: #{tpu_custom_call.1} parent=1 // pred_fallthru
      _
    // Predicated region
    $region14: #{tpu_custom_call.1} parent=1 // pred_check
      _
    $region15: #{tpu_custom_call.1} parent=1 // pred_check_branch
      %47 = sbr.rel (0) target = $region17
    $region16: #{tpu_custom_call.1} parent=1 // pred_region
      %49 = dma.done [#allocation3], 64
    $region17: #{tpu_custom_call.1} parent=1 // pred_fallthru
      _
    // Predicated region
    $region18: #{tpu_custom_call.1} parent=1 // pred_check
      _
    $region19: #{tpu_custom_call.1} parent=1 // pred_check_branch
      %51 = sbr.rel (0) target = $region21
    $region20: #{tpu_custom_call.1} parent=1 // pred_region
      %53 = dma.done [#allocation6], 16
    $region21: #{tpu_custom_call.1} parent=1 // pred_fallthru
      _
    // Predicated region
    $region22: #{tpu_custom_call.1} parent=1 // pred_check
      _
    $region23: #{tpu_custom_call.1} parent=1 // pred_check_branch
      %55 = sbr.rel (0) target = $region25
    $region24: #{tpu_custom_call.1} parent=1 // pred_region
      %57 = dma.done [#allocation6], 2048
    $region25: #{tpu_custom_call.1} parent=1 // pred_fallthru
      _
    %v58 = vld [vmem:[#allocation2] sm:$0xf]
    %v59 = vmul.f32 %v58, %v58
    %v60 = vld [vmem:[#allocation7] sm:$0xff]
    %v61 = vld [vmem:[#allocation7 + $0x8] sm:$0xff]
    %v62 = vld [vmem:[#allocation7 + $0x10] sm:$0xff]
    %v63 = vld [vmem:[#allocation7 + $0x18] sm:$0xff]
    %v64 = vld [vmem:[#allocation7 + $0x20] sm:$0xff]
    %v65 = vld [vmem:[#allocation7 + $0x28] sm:$0xff]
    %v66 = vld [vmem:[#allocation7 + $0x30] sm:$0xff]
    %v67 = vld [vmem:[#allocation7 + $0x38] sm:$0xff]
    %v68 = vld [vmem:[#allocation7 + $0x40] sm:$0xff]
    %v69 = vld [vmem:[#allocation7 + $0x48] sm:$0xff]
    %v70 = vld [vmem:[#allocation7 + $0x50] sm:$0xff]
    %v71 = vld [vmem:[#allocation7 + $0x58] sm:$0xff]
    %v72 = vld [vmem:[#allocation7 + $0x60] sm:$0xff]
    %v73 = vld [vmem:[#allocation7 + $0x68] sm:$0xff]
    %v74 = vld [vmem:[#allocation7 + $0x70] sm:$0xff]
    %v75 = vld [vmem:[#allocation7 + $0x78] sm:$0xff]
    %76 = vmatpush.msra.mxu0 %v75
    %77 = vmatpush.msra.mxu0 %v74
    %78 = vmatpush.msra.mxu0 %v73
    %79 = vmatpush.msra.mxu0 %v72
    %80 = vmatpush.msra.mxu0 %v71
    %81 = vmatpush.msra.mxu0 %v70
    %82 = vmatpush.msra.mxu0 %v69
    %83 = vmatpush.msra.mxu0 %v68
    %84 = vmatpush.msra.mxu0 %v67
    %85 = vmatpush.msra.mxu0 %v66
    %86 = vmatpush.msra.mxu0 %v65
    %87 = vmatpush.msra.mxu0 %v64
    %88 = vmatpush.msra.mxu0 %v63
    %89 = vmatpush.msra.mxu0 %v62
    %90 = vmatpush.msra.mxu0 %v61
    %91 = vmatpush.msra.mxu0 %v60
    %92 = vmatmul.f32.gmra.mxu0 %v59
    %v93 = vpop.f32.mrf.mxu0
    %v94 = vadd.f32 0.0, %v93
    %95 = vdwg.mxu0
    %v96 = vmax.f32 %v94, 1e-24
    %v97 = vrsqrt.pop %v96
    %v98 = vmul.f32 %v97, %v96
    %v99 = vmul.f32 %v98, %v97
    %v100 = vmul.f32 0.5, %v99
    %v101 = vsub.f32 1.5, %v100
    %v102 = vmul.f32 %v97, %v101
    %vm103 = vweird.f32 %v96
    %vm104 = vweird.f32 %v97
    %vm105 = vmor %vm103, %vm104
    %v106 = vsel %vm105, %v97, %v102
    %v107 = vmul.f32 %v106, 5.656854
    %v108 = vld [vmem:[#allocation5] sm:$0x1]
    %v109 = vmul.f32 %v58, %v107
    %v111 = vperm.slane %v108, 0
    %v113 = vmul.f32 %v109, %v111
    %114 = vst [vmem:[#allocation8] sm:$0xf] %v113
    // Predicated region
    $region26: #{tpu_custom_call.1} parent=1 // pred_check
      _
    $region27: #{tpu_custom_call.1} parent=1 // pred_check_branch
      %116 = sbr.rel (0) target = $region29
    $region28: #{tpu_custom_call.1} parent=1 // pred_region
      %118 = vsyncadd [#allocation4], 0
      %s120 = sshll.u32 [#allocation8], 4
      %s121 = int_to_ptr.vmem [resolvable:$true] %s120
      %s122 = sshll.u32 %s3, 4
      %s123 = int_to_ptr.hbm [resolvable:$true] %s122
      %125 = dma.vmem_to_hbm [thread:$0]  %s121, 64, %s123, [#allocation4]
    $region29: #{tpu_custom_call.1} parent=1 // pred_fallthru
      _
    // Predicated region
    $region30: #{tpu_custom_call.1} parent=1 // pred_check
      _
    $region31: #{tpu_custom_call.1} parent=1 // pred_check_branch
      %127 = sbr.rel (0) target = $region33
    $region32: #{tpu_custom_call.1} parent=1 // pred_region
      %129 = dma.done [#allocation4], 64
    $region33: #{tpu_custom_call.1} parent=1 // pred_fallthru
      _
    %130 = vsyncpa [#allocation3], 1
    %131 = vsyncpa [#allocation6], 1
    %132 = vsyncpa [#allocation4], 1

</llo_original>
